<compile_context>
chip_gen: v7x
topology: tpu7x:2x2x1
jax: 0.10.0
libtpu: 0.0.40
codegen_flags: <defaults>
</compile_context>

<pallas_src>
import jax
import jax.numpy as jnp
from jax.experimental import pallas as pl
from jax.experimental.pallas import tpu as pltpu

# TODO(synk): the pretrained tokenizer + XLM-R transformer backbone
# (self.model.transformer) has no clean Pallas equivalent; the kernel starts
# from its output token embeddings and the attention mask.


def _clip_text_head_kernel(embs_ref, w_pool_ref, w_ref, b_ref, out_ref, acc_ref):
    """One (batch tile, seq tile) step of the pooled -> projection -> ReLU head.

    embs_ref   : [TB, TS, Dt] bf16 token embeddings (streamed per tile)
    w_pool_ref : [TB, TS, 1]  f32  pre-normalized pooling weights (mask / len)
    w_ref      : [Dt, H]      bf16 fused projection (W_lt @ W_fc), VMEM-resident
    b_ref      : [1, H]       f32  fused bias       (b_lt @ W_fc + b_fc)
    out_ref    : [TB, H]      f32
    acc_ref    : [TB, Dt]     f32  pooling accumulator (scratch)
    """
    s = pl.program_id(1)

    @pl.when(s == 0)
    def _init():
        acc_ref[...] = jnp.zeros_like(acc_ref)

    # bf16 embs streamed from HBM; upcast, weight and reduce over the sequence
    # tile in f32 on the VPU (the divide already happened in the wrapper).
    acc_ref[...] += jnp.sum(
        embs_ref[...].astype(jnp.float32) * w_pool_ref[...], axis=1)

    @pl.when(s == pl.num_programs(1) - 1)
    def _finalize():
        # Single fused bf16 matmul on the MXU (f32 accumulation) + bias + ReLU.
        pooled = acc_ref[...].astype(jnp.bfloat16)
        z = jnp.dot(pooled, w_ref[...],
                    preferred_element_type=jnp.float32) + b_ref[...]
        out_ref[...] = jnp.maximum(z, 0.0).astype(out_ref.dtype)


def _vmem_capacity_bytes():
    try:
        return int(pltpu.get_tpu_info().vmem_capacity_bytes)
    except Exception:
        return 128 * 1024 * 1024  # v5e/v6e default


def _batch_axis_semantics():
    try:
        kind = jax.devices()[0].device_kind.lower()
    except Exception:
        kind = ""
    # v7x has 2 TensorCores per chip: CORE_PARALLEL shards the batch tiles
    # across them (plain "parallel" has near-zero codegen effect there).
    return pltpu.CORE_PARALLEL if "v7" in kind else pltpu.PARALLEL


def _pick_seq_tile(S, max_rows):
    """Largest divisor of S that is <= max_rows and sublane-aligned (mult of 8).

    Falls back to the full sequence (ts == S) if no aligned divisor exists, so
    sequence blocks are never partial and the pooling reduction never reads
    padded / stale VMEM rows.
    """
    if S <= max(8, max_rows):
        return S
    cand = (min(max_rows, S) // 8) * 8
    while cand >= 8:
        if S % cand == 0:
            return cand
        cand -= 8
    return S


def prepare_clip_text_head_params(w_lt, b_lt, w_fc, b_fc):
    """Fuse LinearTransformation and fc's Linear once (no nonlinearity between):

        (p @ W_lt + b_lt) @ W_fc + b_fc == p @ (W_lt @ W_fc) + (b_lt @ W_fc + b_fc)

    Call this ONCE per weight set and reuse the result — keeping the fusion
    matmul (and its weight reads) out of the per-forward hot path makes it free.
    """
    w_lt = w_lt.astype(jnp.float32)
    w_fc = w_fc.astype(jnp.float32)
    w_fused = (w_lt @ w_fc).astype(jnp.bfloat16)                       # [Dt, H]
    b_fused = (b_lt.astype(jnp.float32) @ w_fc
               + b_fc.astype(jnp.float32)).reshape(1, -1)              # [1, H] f32
    return w_fused, b_fused


def clip_text_head_forward(embs, mask, w_fused, b_fused, *, tb=None, ts=None):
    """Masked mean pool + fused projection + ReLU.

    embs    : [B, S, Dt]  token embeddings (bf16 preferred; f32 is cast)
    mask    : [B, S]      attention mask (1 = real token, 0 = padding)
    w_fused : [Dt, H]     bf16 fused projection from prepare_clip_text_head_params
    b_fused : [1, H]      f32  fused bias
    """
    B, S, Dt = embs.shape
    H = w_fused.shape[1]

    # ---- wrapper-side prep (cheap, plain XLA) --------------------------------
    # Stream embeddings in bf16: the kernel is HBM-bound on this read, so
    # halving the bytes is ~2x wall-clock on every generation.
    # TODO(synk): in the full model the transformer backbone should emit bf16
    # directly so this cast disappears from the hot path.
    if embs.dtype != jnp.bfloat16:
        embs = embs.astype(jnp.bfloat16)
    w_fused = w_fused.astype(jnp.bfloat16)
    b_fused = jnp.asarray(b_fused, jnp.float32).reshape(1, H)

    # Pre-normalized pooling weights; guard all-zero mask rows (reference would
    # divide by zero -> NaN, here such rows return relu(b_fused)).
    mask = mask.astype(jnp.float32)
    den = jnp.maximum(jnp.sum(mask, axis=1, keepdims=True), 1.0)
    w_pool = (mask / den)[:, :, None]                                  # [B, S, 1] f32

    # ---- generation-aware tiling ---------------------------------------------
    vmem_cap = _vmem_capacity_bytes()
    if vmem_cap <= 80 * 1024 * 1024:        # v7x-class: 64 MiB VMEM per TC
        vmem_limit = 56 * 1024 * 1024
        tile_budget = 8 * 1024 * 1024       # bytes per embs buffer (double-buffered)
    else:                                    # v5e / v6e: 128 MiB VMEM
        vmem_limit = 96 * 1024 * 1024
        tile_budget = 12 * 1024 * 1024

    if ts is None:
        # Sequence rows per block such that tb can reach ~128 (fills MXU rows).
        max_rows = max(8, tile_budget // max(1, 128 * Dt * 2))
        ts = _pick_seq_tile(S, max_rows)
    elif S % ts != 0:
        ts = _pick_seq_tile(S, ts)          # never allow partial sequence blocks

    if tb is None:
        tb = tile_budget // max(1, ts * Dt * 2)
        tb = max(8, min(1024, (tb // 8) * 8))
    if tb >= B:
        tb = B                              # single full-batch block
    else:
        tb = max(8, (tb // 8) * 8)          # sublane-aligned output tile

    grid = (pl.cdiv(B, tb), S // ts)

    grid_spec = pltpu.PrefetchScalarGridSpec(
        num_scalar_prefetch=0,
        grid=grid,
        in_specs=[
            # Streamed per (batch, seq) tile; double-buffered by Pallas.
            pl.BlockSpec((tb, ts, Dt), lambda i, s: (i, s, 0)),
            pl.BlockSpec((tb, ts, 1), lambda i, s: (i, s, 0)),
            # Constant index_maps -> weights stay VMEM-resident, no re-DMA.
            pl.BlockSpec((Dt, H), lambda i, s: (0, 0)),
            pl.BlockSpec((1, H), lambda i, s: (0, 0)),
        ],
        out_specs=pl.BlockSpec((tb, H), lambda i, s: (i, 0)),
        scratch_shapes=[pltpu.VMEM((tb, Dt), jnp.float32)],
    )

    return pl.pallas_call(
        _clip_text_head_kernel,
        out_shape=jax.ShapeDtypeStruct((B, H), jnp.float32),
        grid_spec=grid_spec,
        compiler_params=pltpu.CompilerParams(
            # Batch tiles are independent (core-parallel on v7x's 2 TCs);
            # the sequence axis is the pooling reduction -> arbitrary, innermost.
            dimension_semantics=(_batch_axis_semantics(), pltpu.ARBITRARY),
            vmem_limit_bytes=vmem_limit,
        ),
    )(embs, w_pool, w_fused, b_fused)


def clip_text_encoder_forward(embs, mask, w_lt, b_lt, w_fc, b_fc, *, tb=None, ts=None):
    """Convenience entry with unfused weights. For the hot path, call
    prepare_clip_text_head_params() once and reuse its output instead."""
    w_fused, b_fused = prepare_clip_text_head_params(w_lt, b_lt, w_fc, b_fc)
    return clip_text_head_forward(embs, mask, w_fused, b_fused, tb=tb, ts=ts)


def reference_forward(embs, mask, w_lt, b_lt, w_fc, b_fc):
    pooled = (embs * mask[:, :, None]).sum(axis=1) / mask.sum(axis=1)[:, None]
    y = pooled @ w_lt + b_lt
    z = y @ w_fc + b_fc
    return jnp.maximum(z, 0.0)


if __name__ == "__main__":
    # Small, module-consistent shapes: batch 16, seq 16, transformer hidden 128
    # (small stand-in for XLM-R's 768), CLIP dim 512, fc hidden_size 512.
    B, S, Dt, C, H = 16, 16, 128, 512, 512

    key = jax.random.PRNGKey(0)
    k_embs, k_len, k_wlt, k_blt, k_wfc, k_bfc = jax.random.split(key, 6)

    embs = jax.random.normal(k_embs, (B, S, Dt), dtype=jnp.float32)

    # Attention mask with per-text padding (lengths in [3, S]).
    lengths = jax.random.randint(k_len, (B,), 3, S + 1)
    mask = (jnp.arange(S)[None, :] < lengths[:, None]).astype(jnp.float32)

    # Parameters stored [in, out] (transposed from PyTorch's [out, in]).
    w_lt = jax.random.normal(k_wlt, (Dt, C), dtype=jnp.float32) * 0.02
    b_lt = jax.random.normal(k_blt, (1, C), dtype=jnp.float32) * 0.02
    w_fc = jax.random.normal(k_wfc, (C, H), dtype=jnp.float32) * 0.02
    b_fc = jax.random.normal(k_bfc, (1, H), dtype=jnp.float32) * 0.02

    # Fuse the two linear layers once (cached outside the per-call hot path).
    w_fused, b_fused = prepare_clip_text_head_params(w_lt, b_lt, w_fc, b_fc)

    # tb=8, ts=8 -> grid=(2, 2): exercises both the batch-tiled pipeline and
    # the sequence-axis accumulator.
    out = clip_text_head_forward(embs, mask, w_fused, b_fused, tb=8, ts=8)
    out = jax.block_until_ready(out)

    ref = reference_forward(embs, mask, w_lt, b_lt, w_fc, b_fc)
    assert out.shape == (B, H)
    # Tolerance covers bf16 streaming of embs / fused weights vs f32 reference.
    assert jnp.allclose(out, ref, atol=1e-2, rtol=1e-2), "mismatch vs reference"

    print("KERNEL_OK")
</pallas_src>

<mosaic_0001>
module attributes {stable_mosaic.version = 11 : i64} {
  func.func @_clip_text_head_kernel(%arg0: i32, %arg1: i32, %arg2: memref<8x8x128xbf16, #tpu.memory_space<vmem>>, %arg3: memref<8x8x1xf32, #tpu.memory_space<vmem>>, %arg4: memref<128x512xbf16, #tpu.memory_space<vmem>>, %arg5: memref<1x512xf32, #tpu.memory_space<vmem>>, %arg6: memref<8x512xf32, #tpu.memory_space<vmem>>, %arg7: memref<8x128xf32, #tpu.memory_space<vmem>>) attributes {dimension_semantics = [#tpu.dimension_semantics<parallel>, #tpu.dimension_semantics<arbitrary>], iteration_bounds = array<i64: 2, 2>, scalar_prefetch = 0 : i64, scratch_operands = 1 : i64, tpu.core_type = #tpu.core_type<tc>, window_params = [{transform_indices = @transform_0, window_bounds = array<i64: 8, 8, 128>}, {transform_indices = @transform_1, window_bounds = array<i64: 8, 8, 1>}, {pipeline_mode = #tpu.pipeline_mode<synchronous>, transform_indices = @transform_2, window_bounds = array<i64: 128, 512>}, {pipeline_mode = #tpu.pipeline_mode<synchronous>, transform_indices = @transform_3, window_bounds = array<i64: 1, 512>}, {transform_indices = @transform_4, window_bounds = array<i64: 8, 512>}]} {
    %c0_i32 = arith.constant 0 : i32
    %0 = arith.cmpi eq, %arg1, %c0_i32 : i32
    %1 = arith.extui %0 : i1 to i32
    %c0_i32_0 = arith.constant 0 : i32
    %2 = arith.cmpi ne, %1, %c0_i32_0 : i32
    scf.if %2 {
      %cst_11 = arith.constant 0.000000e+00 : f32
      %15 = vector.broadcast %cst_11 : f32 to vector<8x128xf32>
      %c0_12 = arith.constant 0 : index
      %c0_13 = arith.constant 0 : index
      %16 = vector.load %arg7[%c0_12, %c0_13] : memref<8x128xf32, #tpu.memory_space<vmem>>, vector<8x128xf32>
      tpu.vector_store %arg7[%c0_12, %c0_13], %15 {strides = array<i32>} : memref<8x128xf32, #tpu.memory_space<vmem>>, vector<8x128xf32>,
    } else {
    }
    %c0 = arith.constant 0 : index
    %c0_1 = arith.constant 0 : index
    %3 = vector.load %arg7[%c0, %c0_1] : memref<8x128xf32, #tpu.memory_space<vmem>>, vector<8x128xf32>
    %c0_2 = arith.constant 0 : index
    %c0_3 = arith.constant 0 : index
    %c0_4 = arith.constant 0 : index
    %4 = vector.load %arg2[%c0_2, %c0_3, %c0_4] : memref<8x8x128xbf16, #tpu.memory_space<vmem>>, vector<8x8x128xbf16>
    %5 = arith.extf %4 : vector<8x8x128xbf16> to vector<8x8x128xf32>
    %c0_5 = arith.constant 0 : index
    %c0_6 = arith.constant 0 : index
    %c0_7 = arith.constant 0 : index
    %6 = vector.load %arg3[%c0_5, %c0_6, %c0_7] : memref<8x8x1xf32, #tpu.memory_space<vmem>>, vector<8x8x1xf32>
    %7 = vector.broadcast %6 : vector<8x8x1xf32> to vector<8x8x128xf32>
    %8 = arith.mulf %5, %7 : vector<8x8x128xf32>
    %cst = arith.constant dense<0.000000e+00> : vector<8x128xf32>
    %9 = vector.multi_reduction <add>, %8, %cst [1] : vector<8x8x128xf32> to vector<8x128xf32>
    %10 = arith.addf %3, %9 : vector<8x128xf32>
    %c0_8 = arith.constant 0 : index
    %c0_9 = arith.constant 0 : index
    %11 = vector.load %arg7[%c0_8, %c0_9] : memref<8x128xf32, #tpu.memory_space<vmem>>, vector<8x128xf32>
    tpu.vector_store %arg7[%c0_8, %c0_9], %10 {strides = array<i32>} : memref<8x128xf32, #tpu.memory_space<vmem>>, vector<8x128xf32>,
    %c1_i32 = arith.constant 1 : i32
    %12 = arith.cmpi eq, %arg1, %c1_i32 : i32
    %13 = arith.extui %12 : i1 to i32
    %c0_i32_10 = arith.constant 0 : i32
    %14 = arith.cmpi ne, %13, %c0_i32_10 : i32
    scf.if %14 {
      %c0_11 = arith.constant 0 : index
      %c0_12 = arith.constant 0 : index
      %15 = vector.load %arg7[%c0_11, %c0_12] : memref<8x128xf32, #tpu.memory_space<vmem>>, vector<8x128xf32>
      %16 = arith.truncf %15 : vector<8x128xf32> to vector<8x128xbf16>
      %c0_13 = arith.constant 0 : index
      %c0_14 = arith.constant 0 : index
      %17 = vector.load %arg4[%c0_13, %c0_14] : memref<128x512xbf16, #tpu.memory_space<vmem>>, vector<128x512xbf16>
      %cst_15 = arith.constant dense<0.000000e+00> : vector<8x512xf32>
      %18 = tpu.matmul %16, %17, %cst_15 {dimension_numbers = #tpu.dot_dimension_numbers<[1], [0], [0], [1], [0, 0, 1, 1], [], []>} : vector<8x128xbf16>, vector<128x512xbf16>, vector<8x512xf32> -> vector<8x512xf32>
      %c0_16 = arith.constant 0 : index
      %c0_17 = arith.constant 0 : index
      %19 = vector.load %arg5[%c0_16, %c0_17] : memref<1x512xf32, #tpu.memory_space<vmem>>, vector<1x512xf32>
      %20 = vector.broadcast %19 : vector<1x512xf32> to vector<8x512xf32>
      %21 = arith.addf %18, %20 : vector<8x512xf32>
      %cst_18 = arith.constant 0.000000e+00 : f32
      %22 = vector.broadcast %cst_18 : f32 to vector<8x512xf32>
      %23 = arith.maximumf %21, %22 : vector<8x512xf32>
      %c0_19 = arith.constant 0 : index
      %c0_20 = arith.constant 0 : index
      %24 = vector.load %arg6[%c0_19, %c0_20] : memref<8x512xf32, #tpu.memory_space<vmem>>, vector<8x512xf32>
      tpu.vector_store %arg6[%c0_19, %c0_20], %23 {strides = array<i32>} : memref<8x512xf32, #tpu.memory_space<vmem>>, vector<8x512xf32>,
    } else {
    }
    return
  }
  func.func @transform_0(%arg0: i32, %arg1: i32) -> (i32, i32, i32) {
    %c0_i32 = arith.constant 0 : i32
    %c0_i32_0 = arith.constant 0 : i32
    return %arg0, %arg1, %c0_i32 : i32, i32, i32
  }
  func.func @transform_1(%arg0: i32, %arg1: i32) -> (i32, i32, i32) {
    %c0_i32 = arith.constant 0 : i32
    %c0_i32_0 = arith.constant 0 : i32
    return %arg0, %arg1, %c0_i32 : i32, i32, i32
  }
  func.func @transform_2(%arg0: i32, %arg1: i32) -> (i32, i32) {
    %c0_i32 = arith.constant 0 : i32
    %c0_i32_0 = arith.constant 0 : i32
    %c0_i32_1 = arith.constant 0 : i32
    return %c0_i32, %c0_i32_0 : i32, i32
  }
  func.func @transform_3(%arg0: i32, %arg1: i32) -> (i32, i32) {
    %c0_i32 = arith.constant 0 : i32
    %c0_i32_0 = arith.constant 0 : i32
    %c0_i32_1 = arith.constant 0 : i32
    return %c0_i32, %c0_i32_0 : i32, i32
  }
  func.func @transform_4(%arg0: i32, %arg1: i32) -> (i32, i32) {
    %c0_i32 = arith.constant 0 : i32
    %c0_i32_0 = arith.constant 0 : i32
    return %arg0, %c0_i32 : i32, i32
  }
}

</mosaic_0001>

<llo_original>
// kernel: tpu_custom_call.1
$region0: #{tpu_custom_call.1}
  #allocation0 [shape = 'u32[]', space=smem, size = 0x4, offset = 0x4, fixed_abs, tag = 'smem constant byte address 0x4 - core index']
  #allocation1 [shape = 'u32[144,128]{1,0:T(1,128)}', space=vmem, size = 0x12000, scoped, tag = 'internal scratch']
  #allocation2 [shape = 'f32[8,128]{1,0:T(8,128)}', space=vmem, size = 0x1000, scoped, tag = 'scratch operand']
  %s0 = inlined_call_operand.hbm [shape: bf16[16,16,128], index: 0, kind: input, shape index: {}]
  %s1 = inlined_call_operand.hbm [shape: f32[16,16,1], index: 1, kind: input, shape index: {}]
  %s2 = inlined_call_operand.hbm [shape: bf16[128,512], index: 2, kind: input, shape index: {}]
  %s3 = inlined_call_operand.hbm [shape: f32[1,512], index: 3, kind: input, shape index: {}]
  %s4 = inlined_call_operand.hbm [shape: f32[16,512], index: 4, kind: output, shape index: {}]
  %s5 = sld [smem:[#allocation0]]
  $region73: #{tpu_custom_call.1} parent=0
    _
  %s7 = ssub.s32 1, %s5
  %s8 = scalar_select 0, %s7, %s5
  $region1: #{tpu_custom_call.1} parent=0
    #allocation3 [shape = 'u8[32768]{0}', space=vmem, size = 0x8000, scoped, tag = 'input window, operand 0']
    #allocation4 [shape = 's32[2]{0}', space=sflag, size = 0x8, scoped, tag = 'scoped memory for tpu_custom_call.1']
    #allocation5 [shape = 's32[2]{0}', space=sflag, size = 0x8, scoped, tag = 'scoped memory for tpu_custom_call.1']
    #allocation6 [shape = 'u8[65536]{0}', space=vmem, size = 0x10000, scoped, tag = 'input window, operand 1']
    #allocation7 [shape = 's32[2]{0}', space=sflag, size = 0x8, scoped, tag = 'scoped memory for tpu_custom_call.1']
    #allocation8 [shape = 'u8[131072]{0}', space=vmem, size = 0x20000, scoped, tag = 'input window, operand 2, single buffered']
    #allocation9 [shape = 'u8[2048]{0}', space=vmem, size = 0x800, scoped, tag = 'input window, operand 3, single buffered']
    #allocation10 [shape = 's32[1]{0}', space=sflag, size = 0x4, scoped, tag = 'scoped memory for tpu_custom_call.1']
    #allocation11 [shape = 'u8[32768]{0}', space=vmem, size = 0x8000, scoped, tag = 'output window, operand 0']
    %9 = vsyncpa [#allocation4], 0
    %s10 = scalar_lea.sflag [#allocation4], 1
    %11 = vsyncpa %s10, 0
    %12 = vsyncpa [#allocation7], 0
    %s13 = scalar_lea.sflag [#allocation7], 1
    %14 = vsyncpa %s13, 0
    %15 = vsyncpa [#allocation10], 0
    %16 = vsyncpa [#allocation5], 0
    %s17 = scalar_lea.sflag [#allocation5], 1
    %18 = vsyncpa %s17, 0
    loop: start=0, step=1, limit=6
    $region2: #{tpu_custom_call.1} parent=1 // loop_pre_header
      _
    $region3: #{tpu_custom_call.1} parent=1 // loop_header
      %s20 = sphi 0, %s24
      %p21 = scmp.ge.s32.totalorder %s20, 6
      %s27 = sphi 0, %s39
      %s28 = sphi 0, %s35
      %s29 = sphi 0, %s27
      %s30 = sphi 0, %s28
      %s31 = sphi 0, %s29
      %s32 = sphi 0, %s30
      %s44 = sphi 0, %s46
      %s47 = sphi 0, %s44
      %s48 = sphi 0, %s47
      %s64 = sphi 0, %s48
      %s72 = sphi 0, %s74
      %s75 = sphi 0, %s72
      %s76 = sphi 0, %s75
      %s92 = sphi 0, %s76
      %s96 = sphi 0, %s96
      %s98 = sphi 0, %s96
      %s99 = sphi 0, %s98
      %s113 = sphi 0, %s99
      %s117 = sphi 0, %s117
      %s119 = sphi 0, %s117
      %s120 = sphi 0, %s119
      %s134 = sphi 0, %s120
      %s140 = sphi 0, %s142
      %s143 = sphi 0, %s140
      %s144 = sphi 0, %s143
      %s160 = sphi 0, %s144
    $region4: #{tpu_custom_call.1} parent=1 // loop_header_branch
      %23 = sbr.rel (%p21) target = $region8
    $region5: #{tpu_custom_call.1} parent=1 // loop_body
      %s25 = ssub.s32 %s20, 1
      %s26 = ssub.s32 %s20, 2
      %s33 = sadd.s32 1, %s28
      %p34 = scmp.ge.s32.totalorder %s33, 2
      %s35 = scalar_select %p34, 0, %s33
      %s36 = sadd.s32 1, %s27
      %s37 = scalar_select %p34, %s36, %s27
      %p38 = scmp.ge.s32.totalorder %s37, 2
      %s39 = scalar_select %p38, 0, %s37
      %s40 = ssub.s32 %s27, %s39
      %s41 = ssub.s32 %s28, %s35
      %s42 = sor.u32 %s40, %s41
      %p43 = scmp.eq.s32.totalorder %s42, 0
      %s45 = sadd.s32 %s44, 1
      %s46 = scalar_select %p43, %s44, %s45
      %p49 = pneg %p43
      %p50 = scmp.eq.s32.totalorder %s20, 3
      %p51 = por %p49, %p50
      %p52 = scmp.ne.s32.totalorder %s44, %s47
      %p53 = scmp.eq.s32.totalorder %s20, 0
      %p54 = por %p52, %p53
      %p55 = scmp.ne.s32.totalorder %s44, %s47
      %p56 = scmp.eq.s32.totalorder %s25, 3
      %p57 = por %p55, %p56
      %p58 = scmp.ne.s32.totalorder %s47, %s48
      %p59 = scmp.eq.s32.totalorder %s25, 0
      %p60 = por %p58, %p59
      %p61 = scmp.ne.s32.totalorder %s47, %s48
      %p62 = scmp.eq.s32.totalorder %s26, 3
      %p63 = por %p61, %p62
      %p65 = scmp.ne.s32.totalorder %s48, %s64
      %p66 = scmp.eq.s32.totalorder %s26, 0
      %p67 = por %p65, %p66
      %s68 = ssub.s32 %s27, %s39
      %s69 = ssub.s32 %s28, %s35
      %s70 = sor.u32 %s68, %s69
      %p71 = scmp.eq.s32.totalorder %s70, 0
      %s73 = sadd.s32 %s72, 1
      %s74 = scalar_select %p71, %s72, %s73
      %p77 = pneg %p71
      %p78 = scmp.eq.s32.totalorder %s20, 3
      %p79 = por %p77, %p78
      %p80 = scmp.ne.s32.totalorder %s72, %s75
      %p81 = scmp.eq.s32.totalorder %s20, 0
      %p82 = por %p80, %p81
      %p83 = scmp.ne.s32.totalorder %s72, %s75
      %p84 = scmp.eq.s32.totalorder %s25, 3
      %p85 = por %p83, %p84
      %p86 = scmp.ne.s32.totalorder %s75, %s76
      %p87 = scmp.eq.s32.totalorder %s25, 0
      %p88 = por %p86, %p87
      %p89 = scmp.ne.s32.totalorder %s75, %s76
      %p90 = scmp.eq.s32.totalorder %s26, 3
      %p91 = por %p89, %p90
      %p93 = scmp.ne.s32.totalorder %s76, %s92
      %p94 = scmp.eq.s32.totalorder %s26, 0
      %p95 = por %p93, %p94
      %s97 = sadd.s32 %s96, 1
      %p100 = scmp.eq.s32.totalorder %s20, 3
      %p101 = scmp.ne.s32.totalorder %s96, %s98
      %p102 = scmp.eq.s32.totalorder %s20, 0
      %p103 = por %p101, %p102
      %p104 = scmp.ne.s32.totalorder %s96, %s98
      %p105 = scmp.eq.s32.totalorder %s25, 3
      %p106 = por %p104, %p105
      %p107 = scmp.ne.s32.totalorder %s98, %s99
      %p108 = scmp.eq.s32.totalorder %s25, 0
      %p109 = por %p107, %p108
      %p110 = scmp.ne.s32.totalorder %s98, %s99
      %p111 = scmp.eq.s32.totalorder %s26, 3
      %p112 = por %p110, %p111
      %p114 = scmp.ne.s32.totalorder %s99, %s113
      %p115 = scmp.eq.s32.totalorder %s26, 0
      %p116 = por %p114, %p115
      %s118 = sadd.s32 %s117, 1
      %p121 = scmp.eq.s32.totalorder %s20, 3
      %p122 = scmp.ne.s32.totalorder %s117, %s119
      %p123 = scmp.eq.s32.totalorder %s20, 0
      %p124 = por %p122, %p123
      %p125 = scmp.ne.s32.totalorder %s117, %s119
      %p126 = scmp.eq.s32.totalorder %s25, 3
      %p127 = por %p125, %p126
      %p128 = scmp.ne.s32.totalorder %s119, %s120
      %p129 = scmp.eq.s32.totalorder %s25, 0
      %p130 = por %p128, %p129
      %p131 = scmp.ne.s32.totalorder %s119, %s120
      %p132 = scmp.eq.s32.totalorder %s26, 3
      %p133 = por %p131, %p132
      %p135 = scmp.ne.s32.totalorder %s120, %s134
      %p136 = scmp.eq.s32.totalorder %s26, 0
      %p137 = por %p135, %p136
      %s138 = ssub.s32 %s27, %s39
      %p139 = scmp.eq.s32.totalorder %s138, 0
      %s141 = sadd.s32 %s140, 1
      %s142 = scalar_select %p139, %s140, %s141
      %p145 = pneg %p139
      %p146 = scmp.eq.s32.totalorder %s20, 3
      %p147 = por %p145, %p146
      %p148 = scmp.ne.s32.totalorder %s140, %s143
      %p149 = scmp.eq.s32.totalorder %s20, 0
      %p150 = por %p148, %p149
      %p151 = scmp.ne.s32.totalorder %s140, %s143
      %p152 = scmp.eq.s32.totalorder %s25, 3
      %p153 = por %p151, %p152
      %p154 = scmp.ne.s32.totalorder %s143, %s144
      %p155 = scmp.eq.s32.totalorder %s25, 0
      %p156 = por %p154, %p155
      %p157 = scmp.ne.s32.totalorder %s143, %s144
      %p158 = scmp.eq.s32.totalorder %s26, 3
      %p159 = por %p157, %p158
      %p161 = scmp.ne.s32.totalorder %s144, %s160
      %p162 = scmp.eq.s32.totalorder %s26, 0
      %p163 = por %p161, %p162
      %p164 = scmp.le.s32.totalorder 1, %s20
      %p165 = scmp.lt.s32.totalorder %s20, 5
      %p166 = pnand %p164, %p165
      %p167 = pneg %p166
      // Predicated region
      $region9: #{tpu_custom_call.1} parent=5 // pred_check
        _
      $region10: #{tpu_custom_call.1} parent=5 // pred_check_branch
        %169 = sbr.rel (%p166) target = $region12
      $region11: #{tpu_custom_call.1} parent=5 // pred_region
        %s170 = ssub.s32 %s20, 1
        // Predicated region
        $region13: #{tpu_custom_call.1} parent=11 // pred_check
          %p171 = pneg %p109
        $region14: #{tpu_custom_call.1} parent=11 // pred_check_branch
          %173 = sbr.rel (%p171) target = $region16
        $region15: #{tpu_custom_call.1} parent=11 // pred_region
          %s175 = ssub.s32 4096, 4096
          %176 = vsyncadd [#allocation7], %s175
          %s177 = sshll.u32 [#allocation8], 4
          %s178 = int_to_ptr.vmem [resolvable:$true] %s177
          %183 = dma.hbm_to_vmem [thread:$0]  %s2, 4096, %s178, [#allocation7], 256, 256, 16
        $region16: #{tpu_custom_call.1} parent=11 // pred_fallthru
          _
        // Predicated region
        $region17: #{tpu_custom_call.1} parent=11 // pred_check
          %p184 = pneg %p130
        $region18: #{tpu_custom_call.1} parent=11 // pred_check_branch
          %186 = sbr.rel (%p184) target = $region20
        $region19: #{tpu_custom_call.1} parent=11 // pred_region
          %s188 = ssub.s32 64, 64
          %189 = vsyncadd [#allocation10], %s188
          %s191 = sshll.u32 [#allocation9], 4
          %s192 = int_to_ptr.vmem [resolvable:$true] %s191
          %194 = dma.hbm_to_vmem [thread:$0]  %s3, 64, %s192, [#allocation10]
        $region20: #{tpu_custom_call.1} parent=11 // pred_fallthru
          _
      $region12: #{tpu_custom_call.1} parent=5 // pred_fallthru
        _
      %p195 = scmp.lt.s32.totalorder %s20, 4
      // Predicated region
      $region21: #{tpu_custom_call.1} parent=5 // pred_check
        %p196 = pneg %p195
      $region22: #{tpu_custom_call.1} parent=5 // pred_check_branch
        %198 = sbr.rel (%p196) target = $region24
      $region23: #{tpu_custom_call.1} parent=5 // pred_region
        // Predicated region
        $region25: #{tpu_custom_call.1} parent=23 // pred_check
          %p199 = pneg %p54
        $region26: #{tpu_custom_call.1} parent=23 // pred_check_branch
          %201 = sbr.rel (%p199) target = $region28
        $region27: #{tpu_custom_call.1} parent=23 // pred_region
          %s202 = sand.u32 %s44, 1
          %s203 = scalar_lea.sflag [#allocation4], %s202
          %s204 = sand.u32 %s44, 1
          %s205 = smul.addr %s204, 32
          %s206 = scalar_lea.vmem [#allocation3], %s205
          %s207 = smul.u32 8, %s27
          %s209 = ssub.s32 512, 512
          %210 = vsyncadd %s203, %s209
          %s211 = smul.addr %s207, 2
          %s212 = sadd.s32 %s28, %s211
          %s213 = smul.addr %s212, 64
          %s214 = scalar_lea.hbm %s0, %s213
          %s215 = sshll.u32 %s206, 4
          %s216 = int_to_ptr.vmem [resolvable:$true] %s215
          %221 = dma.hbm_to_vmem [thread:$0]  %s214, 512, %s216, %s203, 128, 64, 4
        $region28: #{tpu_custom_call.1} parent=23 // pred_fallthru
          _
        // Predicated region
        $region29: #{tpu_custom_call.1} parent=23 // pred_check
          %p222 = pneg %p82
        $region30: #{tpu_custom_call.1} parent=23 // pred_check_branch
          %224 = sbr.rel (%p222) target = $region32
        $region31: #{tpu_custom_call.1} parent=23 // pred_region
          %s225 = sand.u32 %s20, 1
          %s226 = scalar_lea.sflag [#allocation7], %s225
          %s227 = sand.u32 %s72, 1
          %s228 = smul.addr %s227, 64
          %s229 = scalar_lea.vmem [#allocation6], %s228
          %s230 = smul.u32 8, %s27
          %s232 = ssub.s32 1024, 1024
          %233 = vsyncadd %s226, %s232
          %s234 = smul.addr %s230, 2
          %s235 = sadd.s32 %s28, %s234
          %s236 = smul.addr %s235, 128
          %s237 = scalar_lea.hbm %s1, %s236
          %s238 = sshll.u32 %s229, 4
          %s239 = int_to_ptr.vmem [resolvable:$true] %s238
          %244 = dma.hbm_to_vmem [thread:$0]  %s237, 1024, %s239, %s226, 256, 128, 8
        $region32: #{tpu_custom_call.1} parent=23 // pred_fallthru
          _
      $region24: #{tpu_custom_call.1} parent=5 // pred_fallthru
        _
      %p245 = scmp.le.s32.totalorder 1, %s20
      %p246 = scmp.lt.s32.totalorder %s20, 5
      %p247 = pnand %p245, %p246
      %p248 = pneg %p247
      // Predicated region
      $region33: #{tpu_custom_call.1} parent=5 // pred_check
        _
      $region34: #{tpu_custom_call.1} parent=5 // pred_check_branch
        %250 = sbr.rel (%p247) target = $region36
      $region35: #{tpu_custom_call.1} parent=5 // pred_region
        %s251 = ssub.s32 %s20, 1
        %s252 = sand.u32 %s47, 1
        %s253 = scalar_lea.sflag [#allocation4], %s252
        %s254 = sand.u32 %s47, 1
        %s255 = smul.addr %s254, 32
        %s256 = scalar_lea.vmem [#allocation3], %s255
        // Predicated region
        $region37: #{tpu_custom_call.1} parent=35 // pred_check
          %p257 = pneg %p60
        $region38: #{tpu_custom_call.1} parent=35 // pred_check_branch
          %259 = sbr.rel (%p257) target = $region40
        $region39: #{tpu_custom_call.1} parent=35 // pred_region
          %260 = dma.done %s253, 512
        $region40: #{tpu_custom_call.1} parent=35 // pred_fallthru
          _
        %s261 = sand.u32 %s25, 1
        %s262 = scalar_lea.sflag [#allocation7], %s261
        %s263 = sand.u32 %s75, 1
        %s264 = smul.addr %s263, 64
        %s265 = scalar_lea.vmem [#allocation6], %s264
        // Predicated region
        $region41: #{tpu_custom_call.1} parent=35 // pred_check
          %p266 = pneg %p88
        $region42: #{tpu_custom_call.1} parent=35 // pred_check_branch
          %268 = sbr.rel (%p266) target = $region44
        $region43: #{tpu_custom_call.1} parent=35 // pred_region
          %269 = dma.done %s262, 1024
        $region44: #{tpu_custom_call.1} parent=35 // pred_fallthru
          _
        // Predicated region
        $region45: #{tpu_custom_call.1} parent=35 // pred_check
          %p270 = pneg %p109
        $region46: #{tpu_custom_call.1} parent=35 // pred_check_branch
          %272 = sbr.rel (%p270) target = $region48
        $region47: #{tpu_custom_call.1} parent=35 // pred_region
          %273 = dma.done [#allocation7], 4096
        $region48: #{tpu_custom_call.1} parent=35 // pred_fallthru
          _
        // Predicated region
        $region49: #{tpu_custom_call.1} parent=35 // pred_check
          %p274 = pneg %p130
        $region50: #{tpu_custom_call.1} parent=35 // pred_check_branch
          %276 = sbr.rel (%p274) target = $region52
        $region51: #{tpu_custom_call.1} parent=35 // pred_region
          %277 = dma.done [#allocation10], 64
        $region52: #{tpu_custom_call.1} parent=35 // pred_fallthru
          _
        %s278 = sand.u32 %s47, 1
        %s279 = scalar_lea.sflag [#allocation4], %s278
        %s280 = sand.u32 %s47, 1
        %s281 = smul.addr %s280, 32
        %s282 = scalar_lea.vmem [#allocation3], %s281
        %p283 = pneg %p60
        %p284 = pneg %p57
        %s285 = sand.u32 %s25, 1
        %s286 = scalar_lea.sflag [#allocation7], %s285
        %s287 = sand.u32 %s75, 1
        %s288 = smul.addr %s287, 64
        %s289 = scalar_lea.vmem [#allocation6], %s288
        %p290 = pneg %p88
        %p291 = pneg %p85
        %p292 = pneg %p109
        %p293 = pneg %p106
        %p294 = pneg %p130
        %p295 = pneg %p127
        %p296 = pneg %p156
        %p297 = pneg %p153
        %s298 = sand.u32 %s143, 1
        %s299 = scalar_lea.sflag [#allocation5], %s298
        %s300 = sand.u32 %s143, 1
        %s301 = smul.addr %s300, 32
        %s302 = scalar_lea.vmem [#allocation11], %s301
        %s303 = smul.u32 8, %s29
        %s304 = smul.u32 8, %s29
        %p306 = scmp.eq.s32.totalorder %s30, 0
        // Predicated region
        $region53: #{tpu_custom_call.1} parent=35 // pred_check
          %p307 = pneg %p306
        $region54: #{tpu_custom_call.1} parent=35 // pred_check_branch
          %309 = sbr.rel (%p307) target = $region56
        $region55: #{tpu_custom_call.1} parent=35 // pred_region
          %310 = vst [vmem:[#allocation2] sm:$0xff] 0.0
        $region56: #{tpu_custom_call.1} parent=35 // pred_fallthru
          _
        %v311 = vld [vmem:[#allocation2] sm:$0xff]
        %v312 = vld [vmem:[%s256] sm:$0xf]
        %v313 = vld [vmem:[%s256 + $0x4] sm:$0xf]
        %v314 = vld [vmem:[%s256 + $0x8] sm:$0xf]
        %v315 = vld [vmem:[%s256 + $0xc] sm:$0xf]
        %v316 = vld [vmem:[%s256 + $0x10] sm:$0xf]
        %v317 = vld [vmem:[%s256 + $0x14] sm:$0xf]
        %v318 = vld [vmem:[%s256 + $0x18] sm:$0xf]
        %v319 = vld [vmem:[%s256 + $0x1c] sm:$0xf]
        %v320 = vunpack.c.l.bf16 %v312
        %v321 = vunpack.c.l.bf16 %v313
        %v322 = vunpack.c.l.bf16 %v314
        %v323 = vunpack.c.l.bf16 %v315
        %v324 = vunpack.c.l.bf16 %v316
        %v325 = vunpack.c.l.bf16 %v317
        %v326 = vunpack.c.l.bf16 %v318
        %v327 = vunpack.c.l.bf16 %v319
        %v328 = vld [vmem:[%s265] sm:$0xff]
        %v329 = vld [vmem:[%s265 + $0x8] sm:$0xff]
        %v330 = vld [vmem:[%s265 + $0x10] sm:$0xff]
        %v331 = vld [vmem:[%s265 + $0x18] sm:$0xff]
        %v332 = vld [vmem:[%s265 + $0x20] sm:$0xff]
        %v333 = vld [vmem:[%s265 + $0x28] sm:$0xff]
        %v334 = vld [vmem:[%s265 + $0x30] sm:$0xff]
        %v335 = vld [vmem:[%s265 + $0x38] sm:$0xff]
        %337 = vset.pattern.permute.xlu0 0
        %338 = vperm.xlu0 %337, %v328
        %v339 = vpop.permute.xlu0 %338
        %342 = vset.pattern.permute.xlu0 0
        %343 = vperm.xlu0 %342, %v329
        %v344 = vpop.permute.xlu0 %343
        %347 = vset.pattern.permute.xlu0 0
        %348 = vperm.xlu0 %347, %v330
        %v349 = vpop.permute.xlu0 %348
        %352 = vset.pattern.permute.xlu0 0
        %353 = vperm.xlu0 %352, %v331
        %v354 = vpop.permute.xlu0 %353
        %357 = vset.pattern.permute.xlu0 0
        %358 = vperm.xlu0 %357, %v332
        %v359 = vpop.permute.xlu0 %358
        %362 = vset.pattern.permute.xlu0 0
        %363 = vperm.xlu0 %362, %v333
        %v364 = vpop.permute.xlu0 %363
        %367 = vset.pattern.permute.xlu0 0
        %368 = vperm.xlu0 %367, %v334
        %v369 = vpop.permute.xlu0 %368
        %372 = vset.pattern.permute.xlu0 0
        %373 = vperm.xlu0 %372, %v335
        %v374 = vpop.permute.xlu0 %373
        %v376 = vmul.f32 %v320, %v339
        %v377 = vmul.f32 %v321, %v344
        %v378 = vmul.f32 %v322, %v349
        %v379 = vmul.f32 %v323, %v354
        %v380 = vmul.f32 %v324, %v359
        %v381 = vmul.f32 %v325, %v364
        %v382 = vmul.f32 %v326, %v369
        %v383 = vmul.f32 %v327, %v374
        %v384 = vrot.slane %v376, 4
        %v385 = vadd.f32 %v376, %v384
        %v386 = vrot.slane %v385, 2
        %v387 = vadd.f32 %v385, %v386
        %v388 = vrot.slane %v387, 1
        %v389 = vadd.f32 %v387, %v388
        %v390 = vrot.slane %v377, 4
        %v391 = vadd.f32 %v377, %v390
        %v392 = vrot.slane %v391, 2
        %v393 = vadd.f32 %v391, %v392
        %v394 = vrot.slane %v393, 1
        %v395 = vadd.f32 %v393, %v394
        %v396 = vrot.slane %v378, 4
        %v397 = vadd.f32 %v378, %v396
        %v398 = vrot.slane %v397, 2
        %v399 = vadd.f32 %v397, %v398
        %v400 = vrot.slane %v399, 1
        %v401 = vadd.f32 %v399, %v400
        %v402 = vrot.slane %v379, 4
        %v403 = vadd.f32 %v379, %v402
        %v404 = vrot.slane %v403, 2
        %v405 = vadd.f32 %v403, %v404
        %v406 = vrot.slane %v405, 1
        %v407 = vadd.f32 %v405, %v406
        %v408 = vrot.slane %v380, 4
        %v409 = vadd.f32 %v380, %v408
        %v410 = vrot.slane %v409, 2
        %v411 = vadd.f32 %v409, %v410
        %v412 = vrot.slane %v411, 1
        %v413 = vadd.f32 %v411, %v412
        %v414 = vrot.slane %v381, 4
        %v415 = vadd.f32 %v381, %v414
        %v416 = vrot.slane %v415, 2
        %v417 = vadd.f32 %v415, %v416
        %v418 = vrot.slane %v417, 1
        %v419 = vadd.f32 %v417, %v418
        %v420 = vrot.slane %v382, 4
        %v421 = vadd.f32 %v382, %v420
        %v422 = vrot.slane %v421, 2
        %v423 = vadd.f32 %v421, %v422
        %v424 = vrot.slane %v423, 1
        %v425 = vadd.f32 %v423, %v424
        %v426 = vrot.slane %v383, 4
        %v427 = vadd.f32 %v383, %v426
        %v428 = vrot.slane %v427, 2
        %v429 = vadd.f32 %v427, %v428
        %v430 = vrot.slane %v429, 1
        %v431 = vadd.f32 %v429, %v430
        %vm440 = vcmask 1041409
        %v441 = vsel %vm440, %v395, %v389
        %vm442 = vcmask 1042434
        %v443 = vsel %vm442, %v401, %v441
        %vm444 = vcmask 1043459
        %v445 = vsel %vm444, %v407, %v443
        %vm446 = vcmask 1044484
        %v447 = vsel %vm446, %v413, %v445
        %vm448 = vcmask 1045509
        %v449 = vsel %vm448, %v419, %v447
        %vm450 = vcmask 1046534
        %v451 = vsel %vm450, %v425, %v449
        %vm452 = vcmask 1047559
        %v453 = vsel %vm452, %v431, %v451
        %v455 = vadd.f32 %v311, %v453
        %456 = vst [vmem:[#allocation2] sm:$0xff] %v455
        %p457 = scmp.eq.s32.totalorder %s30, 1
        // Predicated region
        $region57: #{tpu_custom_call.1} parent=35 // pred_check
          %p458 = pneg %p457
        $region58: #{tpu_custom_call.1} parent=35 // pred_check_branch
          %460 = sbr.rel (%p458) target = $region60
        $region59: #{tpu_custom_call.1} parent=35 // pred_region
          %v461 = vld [vmem:[#allocation2] sm:$0xff]
          %v462 = vpack.c.bf16 %v461, %v461
          %v463 = vld [vmem:[#allocation8] sm:$0xff]
          %v464 = vld [vmem:[#allocation8 + $0x8] sm:$0xff]
          %v465 = vld [vmem:[#allocation8 + $0x10] sm:$0xff]
          %v466 = vld [vmem:[#allocation8 + $0x18] sm:$0xff]
          %v467 = vld [vmem:[#allocation8 + $0x20] sm:$0xff]
          %v468 = vld [vmem:[#allocation8 + $0x28] sm:$0xff]
          %v469 = vld [vmem:[#allocation8 + $0x30] sm:$0xff]
          %v470 = vld [vmem:[#allocation8 + $0x38] sm:$0xff]
          %v471 = vld [vmem:[#allocation8 + $0x40] sm:$0xff]
          %v472 = vld [vmem:[#allocation8 + $0x48] sm:$0xff]
          %v473 = vld [vmem:[#allocation8 + $0x50] sm:$0xff]
          %v474 = vld [vmem:[#allocation8 + $0x58] sm:$0xff]
          %v475 = vld [vmem:[#allocation8 + $0x60] sm:$0xff]
          %v476 = vld [vmem:[#allocation8 + $0x68] sm:$0xff]
          %v477 = vld [vmem:[#allocation8 + $0x70] sm:$0xff]
          %v478 = vld [vmem:[#allocation8 + $0x78] sm:$0xff]
          %v479 = vld [vmem:[#allocation8 + $0x80] sm:$0xff]
          %v480 = vld [vmem:[#allocation8 + $0x88] sm:$0xff]
          %v481 = vld [vmem:[#allocation8 + $0x90] sm:$0xff]
          %v482 = vld [vmem:[#allocation8 + $0x98] sm:$0xff]
          %v483 = vld [vmem:[#allocation8 + $0xa0] sm:$0xff]
          %v484 = vld [vmem:[#allocation8 + $0xa8] sm:$0xff]
          %v485 = vld [vmem:[#allocation8 + $0xb0] sm:$0xff]
          %v486 = vld [vmem:[#allocation8 + $0xb8] sm:$0xff]
          %v487 = vld [vmem:[#allocation8 + $0xc0] sm:$0xff]
          %v488 = vld [vmem:[#allocation8 + $0xc8] sm:$0xff]
          %v489 = vld [vmem:[#allocation8 + $0xd0] sm:$0xff]
          %v490 = vld [vmem:[#allocation8 + $0xd8] sm:$0xff]
          %v491 = vld [vmem:[#allocation8 + $0xe0] sm:$0xff]
          %v492 = vld [vmem:[#allocation8 + $0xe8] sm:$0xff]
          %v493 = vld [vmem:[#allocation8 + $0xf0] sm:$0xff]
          %v494 = vld [vmem:[#allocation8 + $0xf8] sm:$0xff]
          %v495 = vld [vmem:[#allocation9] sm:$0xf]
          %v497 = vlaneseq
          %v498 = vshrl.u32 %v497, 7
          %v499 = vsub.s32 0, %v498
          %v500 = vrot.slane %v495, %v499
          %v501 = vlaneseq
          %v502 = vshrl.u32 %v501, 7
          %v503 = vsub.s32 1, %v502
          %v504 = vrot.slane %v495, %v503
          %v505 = vlaneseq
          %v506 = vshrl.u32 %v505, 7
          %v507 = vsub.s32 2, %v506
          %v508 = vrot.slane %v495, %v507
          %v509 = vlaneseq
          %v510 = vshrl.u32 %v509, 7
          %v511 = vsub.s32 3, %v510
          %v512 = vrot.slane %v495, %v511
          %v549 = vunpack.c.l.b16 %v463
          %v550 = vunpack.c.h.b16 %v463
          %v551 = vunpack.c.l.b16 %v464
          %v552 = vunpack.c.h.b16 %v464
          %v553 = vunpack.c.l.b16 %v465
          %v554 = vunpack.c.h.b16 %v465
          %v555 = vunpack.c.l.b16 %v466
          %v556 = vunpack.c.h.b16 %v466
          %v557 = vunpack.c.l.b16 %v467
          %v558 = vunpack.c.h.b16 %v467
          %v559 = vunpack.c.l.b16 %v468
          %v560 = vunpack.c.h.b16 %v468
          %v561 = vunpack.c.l.b16 %v469
          %v562 = vunpack.c.h.b16 %v469
          %v563 = vunpack.c.l.b16 %v470
          %v564 = vunpack.c.h.b16 %v470
          %v565 = vunpack.c.l.b16 %v471
          %v566 = vunpack.c.h.b16 %v471
          %v567 = vunpack.c.l.b16 %v472
          %v568 = vunpack.c.h.b16 %v472
          %v569 = vunpack.c.l.b16 %v473
          %v570 = vunpack.c.h.b16 %v473
          %v571 = vunpack.c.l.b16 %v474
          %v572 = vunpack.c.h.b16 %v474
          %v573 = vunpack.c.l.b16 %v475
          %v574 = vunpack.c.h.b16 %v475
          %v575 = vunpack.c.l.b16 %v476
          %v576 = vunpack.c.h.b16 %v476
          %v577 = vunpack.c.l.b16 %v477
          %v578 = vunpack.c.h.b16 %v477
          %v579 = vunpack.c.l.b16 %v478
          %v580 = vunpack.c.h.b16 %v478
          %v581 = vunpack.c.l.b16 %v479
          %v582 = vunpack.c.h.b16 %v479
          %v583 = vunpack.c.l.b16 %v480
          %v584 = vunpack.c.h.b16 %v480
          %v585 = vunpack.c.l.b16 %v481
          %v586 = vunpack.c.h.b16 %v481
          %v587 = vunpack.c.l.b16 %v482
          %v588 = vunpack.c.h.b16 %v482
          %v589 = vunpack.c.l.b16 %v483
          %v590 = vunpack.c.h.b16 %v483
          %v591 = vunpack.c.l.b16 %v484
          %v592 = vunpack.c.h.b16 %v484
          %v593 = vunpack.c.l.b16 %v485
          %v594 = vunpack.c.h.b16 %v485
          %v595 = vunpack.c.l.b16 %v486
          %v596 = vunpack.c.h.b16 %v486
          %v597 = vunpack.c.l.b16 %v487
          %v598 = vunpack.c.h.b16 %v487
          %v599 = vunpack.c.l.b16 %v488
          %v600 = vunpack.c.h.b16 %v488
          %v601 = vunpack.c.l.b16 %v489
          %v602 = vunpack.c.h.b16 %v489
          %v603 = vunpack.c.l.b16 %v490
          %v604 = vunpack.c.h.b16 %v490
          %v605 = vunpack.c.l.b16 %v491
          %v606 = vunpack.c.h.b16 %v491
          %v607 = vunpack.c.l.b16 %v492
          %v608 = vunpack.c.h.b16 %v492
          %v609 = vunpack.c.l.b16 %v493
          %v610 = vunpack.c.h.b16 %v493
          %v611 = vunpack.c.l.b16 %v494
          %v612 = vunpack.c.h.b16 %v494
          %v613 = vpack.c.b16 %v553, %v549
          %v614 = vpack.c.b16 %v554, %v550
          %v615 = vpack.c.b16 %v555, %v551
          %v616 = vpack.c.b16 %v556, %v552
          %v617 = vpack.c.b16 %v561, %v557
          %v618 = vpack.c.b16 %v562, %v558
          %v619 = vpack.c.b16 %v563, %v559
          %v620 = vpack.c.b16 %v564, %v560
          %v621 = vpack.c.b16 %v569, %v565
          %v622 = vpack.c.b16 %v570, %v566
          %v623 = vpack.c.b16 %v571, %v567
          %v624 = vpack.c.b16 %v572, %v568
          %v625 = vpack.c.b16 %v577, %v573
          %v626 = vpack.c.b16 %v578, %v574
          %v627 = vpack.c.b16 %v579, %v575
          %v628 = vpack.c.b16 %v580, %v576
          %v629 = vpack.c.b16 %v585, %v581
          %v630 = vpack.c.b16 %v586, %v582
          %v631 = vpack.c.b16 %v587, %v583
          %v632 = vpack.c.b16 %v588, %v584
          %v633 = vpack.c.b16 %v593, %v589
          %v634 = vpack.c.b16 %v594, %v590
          %v635 = vpack.c.b16 %v595, %v591
          %v636 = vpack.c.b16 %v596, %v592
          %v637 = vpack.c.b16 %v601, %v597
          %v638 = vpack.c.b16 %v602, %v598
          %v639 = vpack.c.b16 %v603, %v599
          %v640 = vpack.c.b16 %v604, %v600
          %v641 = vpack.c.b16 %v609, %v605
          %v642 = vpack.c.b16 %v610, %v606
          %v643 = vpack.c.b16 %v611, %v607
          %v644 = vpack.c.b16 %v612, %v608
          %677 = vmatprep.subr.bf16.mxu0 %v614
          %678 = vmatpush1.bf16.msra.mxu0 %v613
          %679 = vmatprep.subr.bf16.mxu0 %v618
          %680 = vmatpush1.bf16.msra.mxu0 %v617
          %681 = vmatprep.subr.bf16.mxu0 %v622
          %682 = vmatpush1.bf16.msra.mxu0 %v621
          %683 = vmatprep.subr.bf16.mxu0 %v626
          %684 = vmatpush1.bf16.msra.mxu0 %v625
          %685 = vmatprep.subr.bf16.mxu0 %v630
          %686 = vmatpush1.bf16.msra.mxu0 %v629
          %687 = vmatprep.subr.bf16.mxu0 %v634
          %688 = vmatpush1.bf16.msra.mxu0 %v633
          %689 = vmatprep.subr.bf16.mxu0 %v638
          %690 = vmatpush1.bf16.msra.mxu0 %v637
          %691 = vmatprep.subr.bf16.mxu0 %v642
          %692 = vmatpush1.bf16.msra.mxu0 %v641
          %693 = vmatprep.subr.bf16.mxu0 0
          %694 = vmatpush1.bf16.msra.mxu0 0
          %695 = vmatprep.subr.bf16.mxu0 0
          %696 = vmatpush1.bf16.msra.mxu0 0
          %697 = vmatprep.subr.bf16.mxu0 0
          %698 = vmatpush1.bf16.msra.mxu0 0
          %699 = vmatprep.subr.bf16.mxu0 0
          %700 = vmatpush1.bf16.msra.mxu0 0
          %701 = vmatprep.subr.bf16.mxu0 0
          %702 = vmatpush1.bf16.msra.mxu0 0
          %703 = vmatprep.subr.bf16.mxu0 0
          %704 = vmatpush1.bf16.msra.mxu0 0
          %705 = vmatprep.subr.bf16.mxu0 0
          %706 = vmatpush1.bf16.msra.mxu0 0
          %707 = vmatprep.subr.bf16.mxu0 0
          %708 = vmatpush1.bf16.msra.mxu0 0
          %709 = vmatprep.mubr.bf16.mxu0 0
          %710 = vmatmul.mubr.bf16.gmra.mrb[0].mxu0 %v462
          %v711 = vpop.f32.mrb[0].mxu0
          %v712 = vadd.f32 %v500, %v711
          %v713 = vpop.f32.mrb[0].mxu0
          %v714 = vadd.f32 %v504, %v713
          %v715 = vpop.f32.mrb[0].mxu0
          %v716 = vpop.f32.mrb[0].mxu0
          %717 = vdwg.mxu0
          %718 = vmatprep.subr.bf16.mxu0 %v616
          %719 = vmatpush1.bf16.msra.mxu0 %v615
          %720 = vmatprep.subr.bf16.mxu0 %v620
          %721 = vmatpush1.bf16.msra.mxu0 %v619
          %722 = vmatprep.subr.bf16.mxu0 %v624
          %723 = vmatpush1.bf16.msra.mxu0 %v623
          %724 = vmatprep.subr.bf16.mxu0 %v628
          %725 = vmatpush1.bf16.msra.mxu0 %v627
          %726 = vmatprep.subr.bf16.mxu0 %v632
          %727 = vmatpush1.bf16.msra.mxu0 %v631
          %728 = vmatprep.subr.bf16.mxu0 %v636
          %729 = vmatpush1.bf16.msra.mxu0 %v635
          %730 = vmatprep.subr.bf16.mxu0 %v640
          %731 = vmatpush1.bf16.msra.mxu0 %v639
          %732 = vmatprep.subr.bf16.mxu0 %v644
          %733 = vmatpush1.bf16.msra.mxu0 %v643
          %734 = vmatprep.subr.bf16.mxu0 0
          %735 = vmatpush1.bf16.msra.mxu0 0
          %736 = vmatprep.subr.bf16.mxu0 0
          %737 = vmatpush1.bf16.msra.mxu0 0
          %738 = vmatprep.subr.bf16.mxu0 0
          %739 = vmatpush1.bf16.msra.mxu0 0
          %740 = vmatprep.subr.bf16.mxu0 0
          %741 = vmatpush1.bf16.msra.mxu0 0
          %742 = vmatprep.subr.bf16.mxu0 0
          %743 = vmatpush1.bf16.msra.mxu0 0
          %744 = vmatprep.subr.bf16.mxu0 0
          %745 = vmatpush1.bf16.msra.mxu0 0
          %746 = vmatprep.subr.bf16.mxu0 0
          %747 = vmatpush1.bf16.msra.mxu0 0
          %748 = vmatprep.subr.bf16.mxu0 0
          %749 = vmatpush1.bf16.msra.mxu0 0
          %750 = vmatprep.mubr.bf16.mxu0 0
          %751 = vmatmul.mubr.bf16.gmra.mrb[0].mxu0 %v462
          %v752 = vpop.f32.mrb[0].mxu0
          %v753 = vadd.f32 %v508, %v752
          %v754 = vpop.f32.mrb[0].mxu0
          %v755 = vadd.f32 %v512, %v754
          %v756 = vpop.f32.mrb[0].mxu0
          %v757 = vpop.f32.mrb[0].mxu0
          %758 = vdwg.mxu0
          %v759 = vmax.f32 %v712, 0.0
          %v760 = vmax.f32 %v714, 0.0
          %v761 = vmax.f32 %v753, 0.0
          %v762 = vmax.f32 %v755, 0.0
          %763 = vst [vmem:[%s302] sm:$0xff] %v759
          %764 = vst [vmem:[%s302 + $0x8] sm:$0xff] %v760
          %765 = vst [vmem:[%s302 + $0x10] sm:$0xff] %v761
          %766 = vst [vmem:[%s302 + $0x18] sm:$0xff] %v762
        $region60: #{tpu_custom_call.1} parent=35 // pred_fallthru
          _
        %s767 = sand.u32 %s143, 1
        %s768 = scalar_lea.sflag [#allocation5], %s767
        %s769 = sand.u32 %s143, 1
        %s770 = smul.addr %s769, 32
        %s771 = scalar_lea.vmem [#allocation11], %s770
        // Predicated region
        $region61: #{tpu_custom_call.1} parent=35 // pred_check
          %p772 = pneg %p153
        $region62: #{tpu_custom_call.1} parent=35 // pred_check_branch
          %774 = sbr.rel (%p772) target = $region64
        $region63: #{tpu_custom_call.1} parent=35 // pred_region
          %s776 = ssub.s32 512, 512
          %777 = vsyncadd %s768, %s776
          %s778 = smul.addr %s29, 4
          %s779 = smul.addr %s778, 128
          %s780 = scalar_lea.hbm %s4, %s779
          %s782 = sshll.u32 %s771, 4
          %s783 = int_to_ptr.vmem [resolvable:$true] %s782
          %785 = dma.vmem_to_hbm [thread:$0]  %s783, 512, %s780, %s768
        $region64: #{tpu_custom_call.1} parent=35 // pred_fallthru
          _
      $region36: #{tpu_custom_call.1} parent=5 // pred_fallthru
        _
      %p786 = scmp.le.s32.totalorder 2, %s20
      // Predicated region
      $region65: #{tpu_custom_call.1} parent=5 // pred_check
        %p787 = pneg %p786
      $region66: #{tpu_custom_call.1} parent=5 // pred_check_branch
        %789 = sbr.rel (%p787) target = $region68
      $region67: #{tpu_custom_call.1} parent=5 // pred_region
        %s790 = ssub.s32 %s20, 2
        // Predicated region
        $region69: #{tpu_custom_call.1} parent=67 // pred_check
          %p791 = pneg %p159
        $region70: #{tpu_custom_call.1} parent=67 // pred_check_branch
          %793 = sbr.rel (%p791) target = $region72
        $region71: #{tpu_custom_call.1} parent=67 // pred_region
          %s794 = sand.u32 %s144, 1
          %s795 = scalar_lea.sflag [#allocation5], %s794
          %s796 = sand.u32 %s144, 1
          %s797 = smul.addr %s796, 32
          %s798 = scalar_lea.vmem [#allocation11], %s797
          %799 = dma.done %s795, 512
        $region72: #{tpu_custom_call.1} parent=67 // pred_fallthru
          _
      $region68: #{tpu_custom_call.1} parent=5 // pred_fallthru
        _
    $region6: #{tpu_custom_call.1} parent=1 // loop_footer
      %s24 = sadd.s32 1, %s20
    $region7: #{tpu_custom_call.1} parent=1 // loop_footer_branch
      %19 = sbr.rel target = $region3
    $region8: #{tpu_custom_call.1} parent=1 // loop_exit
      _
    %800 = vsyncpa [#allocation4], 1
    %s801 = scalar_lea.sflag [#allocation4], 1
    %802 = vsyncpa %s801, 1
    %803 = vsyncpa [#allocation7], 1
    %s804 = scalar_lea.sflag [#allocation7], 1
    %805 = vsyncpa %s804, 1
    %806 = vsyncpa [#allocation10], 1
    %807 = vsyncpa [#allocation5], 1
    %s808 = scalar_lea.sflag [#allocation5], 1
    %809 = vsyncpa %s808, 1

</llo_original>
